<compile_context>
chip_gen: v7x
topology: tpu7x:2x2x1
jax: 0.10.0
libtpu: 0.0.40
codegen_flags: <defaults>
</compile_context>

<pallas_src>
import jax
import jax.numpy as jnp
from jax.experimental import pallas as pl
from jax.experimental.pallas import tpu as pltpu


_LANE = 128
_FALLBACK_BYTES = 1 << 20    # below this, XLA native concat wins (launch overhead)
_DMA_MIN_SEG_BYTES = 512     # per-row segment size gate for the HBM->HBM DMA path


def _round_up(x, m):
    return ((x + m - 1) // m) * m


def _sublane_multiple(dtype):
    itemsize = jnp.dtype(dtype).itemsize
    return {4: 8, 2: 16, 1: 32}.get(itemsize, 8)


def _vmem_target_bytes():
    # Generation-aware budget for the double-buffered tile footprint.
    # v6e/v7x scoped default is 32 MiB -> aim for 24 MiB; v5e (16 MiB scoped
    # default) and older parts get a conservative 12 MiB.
    try:
        kind = jax.devices()[0].device_kind.lower()
    except Exception:
        kind = ""
    if "v6" in kind or "v7" in kind:
        return 24 * 1024 * 1024
    return 12 * 1024 * 1024


def _concat_dma(xs2d, widths, offsets, lead, wtot, out_dtype, total_bytes):
    """Lane-aligned wide pieces: one strided HBM->HBM DMA per piece."""
    n = len(xs2d)

    def kernel(*refs):
        in_refs = refs[:n]
        out_ref = refs[n]
        sem = refs[n + 1]
        copies = []
        for k, (r, o, w) in enumerate(zip(in_refs, offsets, widths)):
            cp = pltpu.make_async_copy(r, out_ref.at[:, o:o + w], sem.at[k])
            cp.start()
            copies.append(cp)
        for cp in copies:
            cp.wait()

    return pl.pallas_call(
        kernel,
        out_shape=jax.ShapeDtypeStruct((lead, wtot), out_dtype),
        in_specs=[pl.BlockSpec(memory_space=pl.ANY)] * n,
        out_specs=pl.BlockSpec(memory_space=pl.ANY),
        scratch_shapes=[pltpu.SemaphoreType.DMA((n,))],
        cost_estimate=pl.CostEstimate(
            flops=0, transcendentals=0, bytes_accessed=2 * total_bytes),
    )(*xs2d)


def _concat_tiled(xs2d, widths, offsets, lead, wtot, out_dtype, total_bytes):
    """Unaligned pieces: row-tiled HBM->VMEM->HBM copy with wide static stores."""
    itemsize = jnp.dtype(out_dtype).itemsize
    sub = _sublane_multiple(out_dtype)

    # Honest VMEM accounting: every piece occupies full 128-lane tiles in VMEM,
    # and every buffer (inputs + output) is double-buffered by the pipeline.
    padded_lanes = sum(_round_up(w, _LANE) for w in widths) + _round_up(wtot, _LANE)
    bytes_per_row = 2 * padded_lanes * itemsize

    target = _vmem_target_bytes()
    tr_budget = (target // bytes_per_row) // sub * sub

    if lead <= sub:
        tr = lead                          # full-extent block (allowed)
    else:
        tr = max(sub, tr_budget)
        if tr >= lead:
            if lead >= 2 * sub:
                # Keep >= 2 grid steps: enables prefetch/writeback overlap and
                # lets "parallel" shard the grid across v7x's two TensorCores.
                tr = _round_up(pl.cdiv(lead, 2), sub)
            else:
                tr = lead

    grid = (pl.cdiv(lead, tr),)

    def kernel(*refs):
        out_ref = refs[-1]
        for r, o, w in zip(refs[:-1], offsets, widths):
            # Static column slice -> single wide store per input piece.
            out_ref[:, o:o + w] = r[...]

    return pl.pallas_call(
        kernel,
        out_shape=jax.ShapeDtypeStruct((lead, wtot), out_dtype),
        grid=grid,
        in_specs=[pl.BlockSpec((tr, w), lambda i: (i, 0)) for w in widths],
        out_specs=pl.BlockSpec((tr, wtot), lambda i: (i, 0)),
        compiler_params=pltpu.CompilerParams(
            dimension_semantics=("parallel",),
        ),
        cost_estimate=pl.CostEstimate(
            flops=0, transcendentals=0, bytes_accessed=2 * total_bytes),
    )(*xs2d)


def concatenate_pallas(xs, dim=-1):
    """Equivalent of torch.cat(xs, dim=dim) for a list/tuple of arrays."""
    xs = list(xs)
    assert len(xs) >= 1, "need at least one tensor to concatenate"
    if len(xs) == 1:
        return xs[0]

    nd = xs[0].ndim
    axis = dim % nd

    out_dtype = jnp.result_type(*[x.dtype for x in xs])
    itemsize = jnp.dtype(out_dtype).itemsize
    xs = [x.astype(out_dtype) for x in xs]

    # Collapse to 2D: rows = dims before axis, cols = axis-dim * dims after axis.
    lead = 1
    for d in xs[0].shape[:axis]:
        lead *= d
    trail = 1
    for d in xs[0].shape[axis + 1:]:
        trail *= d

    widths = [x.shape[axis] * trail for x in xs]
    wtot = sum(widths)
    total_bytes = lead * wtot * itemsize

    out_shape = list(xs[0].shape)
    out_shape[axis] = sum(x.shape[axis] for x in xs)

    # Fast path: tiny or lane-sparse outputs are dominated by launch overhead
    # and masked partial stores -> XLA's native concat is strictly better.
    if total_bytes < _FALLBACK_BYTES or wtot < _LANE:
        return jnp.concatenate(xs, axis=axis)

    offsets = []
    off = 0
    for w in widths:
        offsets.append(off)
        off += w

    # Metadata-only reshapes (contiguous row-major).
    xs2d = [jnp.reshape(x, (lead, x.shape[axis] * trail)) for x in xs]

    dma_ok = all(w % _LANE == 0 and w * itemsize >= _DMA_MIN_SEG_BYTES
                 for w in widths)
    if dma_ok:
        out2d = _concat_dma(xs2d, widths, offsets, lead, wtot, out_dtype,
                            total_bytes)
    else:
        out2d = _concat_tiled(xs2d, widths, offsets, lead, wtot, out_dtype,
                              total_bytes)

    return jnp.reshape(out2d, out_shape)


if __name__ == "__main__":
    key = jax.random.PRNGKey(0)
    k1, k2, k3, k4 = jax.random.split(key, 4)

    # Case 1: tiny NCHW maps, module-default dim=-1 -> fast-path (XLA concat).
    a = jax.random.normal(k1, (2, 4, 16, 16), dtype=jnp.float32)
    b = jax.random.normal(k2, (2, 4, 16, 8), dtype=jnp.float32)
    c = jax.random.normal(k3, (2, 4, 16, 16), dtype=jnp.float32)
    out = jax.block_until_ready(concatenate_pallas([a, b, c], dim=-1))
    ref = jnp.concatenate([a, b, c], axis=-1)
    assert out.shape == (2, 4, 16, 40), out.shape
    assert out.dtype == a.dtype
    assert bool(jnp.array_equal(out, ref))

    # Case 2: channel concat (dim=1), as the module allows -> fast path.
    d = jax.random.normal(k4, (2, 3, 16, 16), dtype=jnp.float32)
    out2 = jax.block_until_ready(concatenate_pallas([a, d], dim=1))
    ref2 = jnp.concatenate([a, d], axis=1)
    assert out2.shape == (2, 7, 16, 16), out2.shape
    assert bool(jnp.array_equal(out2, ref2))

    # Case 3: lane-aligned wide pieces -> direct HBM->HBM DMA path.
    e = jax.random.normal(k1, (2, 8, 32, 512), dtype=jnp.float32)
    f = jax.random.normal(k2, (2, 8, 32, 256), dtype=jnp.float32)
    out3 = jax.block_until_ready(concatenate_pallas([e, f], dim=-1))
    ref3 = jnp.concatenate([e, f], axis=-1)
    assert out3.shape == (2, 8, 32, 768), out3.shape
    assert bool(jnp.array_equal(out3, ref3))

    # Case 4: unaligned widths -> tiled VMEM copy path; lead = 2*4*513 = 4104 is
    # deliberately not divisible by the row tile, locking in the masked
    # partial-final-block behavior.
    g = jax.random.normal(k3, (2, 4, 513, 96), dtype=jnp.float32)
    h = jax.random.normal(k4, (2, 4, 513, 64), dtype=jnp.float32)
    out4 = jax.block_until_ready(concatenate_pallas([g, h], dim=-1))
    ref4 = jnp.concatenate([g, h], axis=-1)
    assert out4.shape == (2, 4, 513, 160), out4.shape
    assert bool(jnp.array_equal(out4, ref4))

    print("KERNEL_OK")
</pallas_src>

<mosaic_0001>
module attributes {stable_mosaic.version = 11 : i64} {
  func.func @kernel(%arg0: memref<512x512xf32, #tpu.memory_space<any>>, %arg1: memref<512x256xf32, #tpu.memory_space<any>>, %arg2: memref<512x768xf32, #tpu.memory_space<any>>, %arg3: memref<2x!tpu.dma_semaphore, #tpu.memory_space<semaphore_mem>>) attributes {dimension_semantics = [], scalar_prefetch = 0 : i64, scratch_operands = 1 : i64, tpu.core_type = #tpu.core_type<tc>} {
    %c0_i32 = arith.constant 0 : i32
    %c0_i32_0 = arith.constant 0 : i32
    %c0_i32_1 = arith.constant 0 : i32
    %0 = tpu.memref_slice %arg2[%c0_i32_0, %c0_i32_1] : memref<512x768xf32, #tpu.memory_space<any>> -> memref<512x512xf32, #tpu.memory_space<any>>
    %1 = tpu.memref_slice %arg3[%c0_i32] : memref<2x!tpu.dma_semaphore, #tpu.memory_space<semaphore_mem>> -> memref<1x!tpu.dma_semaphore, #tpu.memory_space<semaphore_mem>>
    %2 = tpu.memref_squeeze %1 : memref<1x!tpu.dma_semaphore, #tpu.memory_space<semaphore_mem>> -> memref<!tpu.dma_semaphore, #tpu.memory_space<semaphore_mem>>
    tpu.enqueue_dma source(%arg0 : memref<512x512xf32, #tpu.memory_space<any>>) target(%0 : memref<512x512xf32, #tpu.memory_space<any>>) target_semaphore(%2 : memref<!tpu.dma_semaphore, #tpu.memory_space<semaphore_mem>>)
    %c1_i32 = arith.constant 1 : i32
    %c0_i32_2 = arith.constant 0 : i32
    %c512_i32 = arith.constant 512 : i32
    %3 = tpu.memref_slice %arg2[%c0_i32_2, %c512_i32] : memref<512x768xf32, #tpu.memory_space<any>> -> memref<512x256xf32, #tpu.memory_space<any>>
    %4 = tpu.memref_slice %arg3[%c1_i32] : memref<2x!tpu.dma_semaphore, #tpu.memory_space<semaphore_mem>> -> memref<1x!tpu.dma_semaphore, #tpu.memory_space<semaphore_mem>>
    %5 = tpu.memref_squeeze %4 : memref<1x!tpu.dma_semaphore, #tpu.memory_space<semaphore_mem>> -> memref<!tpu.dma_semaphore, #tpu.memory_space<semaphore_mem>>
    tpu.enqueue_dma source(%arg1 : memref<512x256xf32, #tpu.memory_space<any>>) target(%3 : memref<512x256xf32, #tpu.memory_space<any>>) target_semaphore(%5 : memref<!tpu.dma_semaphore, #tpu.memory_space<semaphore_mem>>)
    %c0_i32_3 = arith.constant 0 : i32
    %c0_i32_4 = arith.constant 0 : i32
    %c0_i32_5 = arith.constant 0 : i32
    %6 = tpu.memref_slice %arg2[%c0_i32_4, %c0_i32_5] : memref<512x768xf32, #tpu.memory_space<any>> -> memref<512x512xf32, #tpu.memory_space<any>>
    %7 = tpu.memref_slice %arg3[%c0_i32_3] : memref<2x!tpu.dma_semaphore, #tpu.memory_space<semaphore_mem>> -> memref<1x!tpu.dma_semaphore, #tpu.memory_space<semaphore_mem>>
    %8 = tpu.memref_squeeze %7 : memref<1x!tpu.dma_semaphore, #tpu.memory_space<semaphore_mem>> -> memref<!tpu.dma_semaphore, #tpu.memory_space<semaphore_mem>>
    tpu.wait_dma2 semaphore(%8 : memref<!tpu.dma_semaphore, #tpu.memory_space<semaphore_mem>>) src(%arg0 : memref<512x512xf32, #tpu.memory_space<any>>) dst(%6 : memref<512x512xf32, #tpu.memory_space<any>>)
    %c1_i32_6 = arith.constant 1 : i32
    %c0_i32_7 = arith.constant 0 : i32
    %c512_i32_8 = arith.constant 512 : i32
    %9 = tpu.memref_slice %arg2[%c0_i32_7, %c512_i32_8] : memref<512x768xf32, #tpu.memory_space<any>> -> memref<512x256xf32, #tpu.memory_space<any>>
    %10 = tpu.memref_slice %arg3[%c1_i32_6] : memref<2x!tpu.dma_semaphore, #tpu.memory_space<semaphore_mem>> -> memref<1x!tpu.dma_semaphore, #tpu.memory_space<semaphore_mem>>
    %11 = tpu.memref_squeeze %10 : memref<1x!tpu.dma_semaphore, #tpu.memory_space<semaphore_mem>> -> memref<!tpu.dma_semaphore, #tpu.memory_space<semaphore_mem>>
    tpu.wait_dma2 semaphore(%11 : memref<!tpu.dma_semaphore, #tpu.memory_space<semaphore_mem>>) src(%arg1 : memref<512x256xf32, #tpu.memory_space<any>>) dst(%9 : memref<512x256xf32, #tpu.memory_space<any>>)
    return
  }
}

</mosaic_0001>

<llo_original>
// kernel: tpu_custom_call.1
$region0: #{tpu_custom_call.1}
  #allocation0 [shape = 'u32[]', space=smem, size = 0x4, offset = 0x4, fixed_abs, tag = 'smem constant byte address 0x4 - core index']
  #allocation1 [shape = 'u32[144,128]{1,0:T(1,128)}', space=vmem, size = 0x12000, scoped, tag = 'internal scratch']
  #allocation2 [shape = 's32[2]{0}', space=sflag, size = 0x8, scoped, tag = 'scratch operand']
  #allocation3 [shape = 's32[]', space=sflag, size = 0x4, offset = 0, fixed_abs, tag = 'sflag constant byte address 0x0 - dummy sync flag']
  #allocation5 [shape = 's32[]', space=sflag, size = 0x4, offset = 0, fixed_abs, tag = 'sflag constant byte address 0x0 - dummy sync flag']
  %s0 = inlined_call_operand.hbm [shape: f32[512,512], index: 0, kind: input, shape index: {}]
  %s1 = inlined_call_operand.hbm [shape: f32[512,256], index: 1, kind: input, shape index: {}]
  %s2 = inlined_call_operand.hbm [shape: f32[512,768], index: 2, kind: output, shape index: {}]
  %s3 = sld [smem:[#allocation0]]
  $region2: #{tpu_custom_call.1} parent=0
    _
  %s5 = ssub.s32 1, %s3
  %s6 = scalar_select 0, %s5, %s3
  $region1: #{tpu_custom_call.1} parent=0
    #allocation4 [shape = 'u32[3]{0}', space=smem, size = 0xc, scoped, tag = 'DMA stride descriptor']
    #allocation6 [shape = 'u32[3]{0}', space=smem, size = 0xc, scoped, tag = 'DMA stride descriptor']
    %s8 = sshll.u32 1, 14
    %s9 = sxor.u32 4294967295, %s8
    %s12 = sshll.u32 3, 24
    %s13 = sxor.u32 4294967295, %s12
    %s14 = sand.u32 0, %s13
    %s16 = sor.u32 %s14, 0
    %19 = sst [smem:[#allocation4]] 512
    %s20 = scalar_lea.smem [#allocation4], 1
    %21 = sst [smem:[%s20]] 768
    %s22 = scalar_lea.smem [#allocation4], 2
    %23 = sst [smem:[%s22]] 32
    %25 = dma.general %s0, 32768, %s2, [#allocation2], [#allocation3], [#allocation4], %s16, 0
    %s26 = scalar_lea.hbm %s2, 512
    %s27 = scalar_lea.sflag [#allocation2], 1
    %s29 = sshll.u32 1, 14
    %s30 = sxor.u32 4294967295, %s29
    %s33 = sshll.u32 3, 24
    %s34 = sxor.u32 4294967295, %s33
    %s35 = sand.u32 0, %s34
    %s37 = sor.u32 %s35, 0
    %40 = sst [smem:[#allocation6]] 256
    %s41 = scalar_lea.smem [#allocation6], 1
    %42 = sst [smem:[%s41]] 768
    %s43 = scalar_lea.smem [#allocation6], 2
    %44 = sst [smem:[%s43]] 16
    %46 = dma.general %s1, 16384, %s26, %s27, [#allocation5], [#allocation6], %s37, 0
    %s47 = smul.u32 8, 64
    %s48 = smul.u32 %s47, 4
    %s49 = sshll.u32 %s48, 4
    %50 = dma.done [#allocation2], %s49
    %s51 = smul.u32 %s47, 2
    %s52 = sshll.u32 %s51, 4
    %53 = dma.done %s27, %s52
  %54 = vsyncmov [#allocation2]
  %s55 = vpop.sfrf %54
  %p56 = scmp.eq.s32.totalorder %s55, 0
  %p57 = pneg %p56
  %59 = shalt.err (%p57)
  %s60 = scalar_lea.sflag [#allocation2], 1
  %61 = vsyncmov %s60
  %s62 = vpop.sfrf %61
  %p63 = scmp.eq.s32.totalorder %s62, 0
  %p64 = pneg %p63
  %66 = shalt.err (%p64)

</llo_original>
